<compile_context>
chip_gen: v7x
topology: tpu7x:2x2x1
jax: 0.10.0
libtpu: 0.0.40
codegen_flags: <defaults>
</compile_context>

<pallas_src>
import functools

import jax
import jax.numpy as jnp
from jax.experimental import pallas as pl
from jax.experimental.pallas import tpu as pltpu


def focal_loss_kernel(logits_ref, target_ref, weight_ref, out_ref, *, gamma):
    logits = logits_ref[...].astype(jnp.float32)       # (TM, C)
    tgt = target_ref[...]                              # (TM, 1) int32
    w = weight_ref[...].astype(jnp.float32)            # (1, C)
    TM, C = logits.shape

    # One-hot selection mask (iota + compare); reused for both gathers.
    onehot = jax.lax.broadcasted_iota(jnp.int32, (TM, C), 1) == tgt      # bool

    # Log-softmax gather: never materialize the full probs matrix.
    m = jnp.max(logits, axis=1, keepdims=True)                           # (TM, 1)
    x_t = jnp.sum(jnp.where(onehot, logits, 0.0), axis=1, keepdims=True) # logit of true class
    lse = jnp.log(jnp.sum(jnp.exp(logits - m), axis=1, keepdims=True))   # (TM, 1)
    logp_t = (x_t - m) - lse                                             # (TM, 1)

    # weight[target] via the same mask (single (1,C)->(TM,C) broadcast).
    w_t = jnp.sum(jnp.where(onehot, jnp.broadcast_to(w, (TM, C)), 0.0),
                  axis=1, keepdims=True)                                 # (TM, 1)

    per_row = logp_t * w_t
    if gamma != 0.0:
        p_t = jnp.exp(logp_t)
        one_minus_p = 1.0 - p_t
        g_int = int(gamma)
        if float(g_int) == gamma and 0 < g_int <= 8:
            # Integer exponent: cheap VPU multiply chain (no EUP transcendentals).
            fl = one_minus_p
            for _ in range(g_int - 1):
                fl = fl * one_minus_p
        else:
            # General float exponent: exp(gamma * log(1 - p_t)).
            fl = jnp.exp(gamma * jnp.log1p(-p_t))
        per_row = per_row * fl

    # Per-row weighted log-prob; rows of a padded last tile are dropped on
    # writeback by the pipeline, so no explicit mask is needed.
    out_ref[...] = per_row


def focal_loss(logits, target, weight, gamma=0.0, block_rows=None):
    """-sum(log p_t * (1-p_t)^gamma * weight[target]) / N  (matches PyTorch FocalLoss)."""
    assert gamma >= 0
    N, C = logits.shape
    if block_rows is None:
        # Multiple of 8 (sublane), capped so the lane-padded (TM, 128) f32 tile
        # x2 (double buffering) stays far under the scoped VMEM limit on every
        # generation (v5e/v6e 32 MiB default, v7x 64 MiB physical).
        block_rows = min(2048, ((N + 7) // 8) * 8)
    TM = block_rows
    num_tiles = pl.cdiv(N, TM)

    kernel = functools.partial(focal_loss_kernel, gamma=float(gamma))
    per_row = pl.pallas_call(
        kernel,
        out_shape=jax.ShapeDtypeStruct((N, 1), jnp.float32),
        grid=(num_tiles,),
        in_specs=[
            pl.BlockSpec((TM, C), lambda i: (i, 0)),   # logits tile (native dtype)
            pl.BlockSpec((TM, 1), lambda i: (i, 0)),   # target tile
            pl.BlockSpec((1, C), lambda i: (0, 0)),    # class weights (resident)
        ],
        out_specs=pl.BlockSpec((TM, 1), lambda i: (i, 0)),
        compiler_params=pltpu.CompilerParams(
            dimension_semantics=("parallel",)),
    )(
        logits,                                   # no up-cast at the HBM boundary
        target.reshape(N, 1).astype(jnp.int32),
        weight.reshape(1, C).astype(jnp.float32),
    )
    # Tiny final reduction + normalization in JAX (lets the grid shard across cores).
    return -jnp.sum(per_row) / N


def focal_loss_ref(logits, target, weight, gamma=0.0):
    probs = jax.nn.softmax(logits.astype(jnp.float32), axis=1)
    p_t = jnp.take_along_axis(probs, target.reshape(-1, 1).astype(jnp.int32), axis=1)
    cb = weight[target].reshape(-1, 1)
    fl = jnp.power(1.0 - p_t, gamma)
    return -jnp.sum(jnp.log(p_t) * fl * cb) / logits.shape[0]


if __name__ == "__main__":
    key = jax.random.PRNGKey(0)
    k1, k2, k3 = jax.random.split(key, 3)

    N, C = 8, 10          # CIFAR-10-like: batch of 8, 10 classes
    gamma = 2.0

    logits = jax.random.normal(k1, (N, C), dtype=jnp.float32)
    target = jax.random.randint(k2, (N,), 0, C, dtype=jnp.int32)
    weight = jax.random.uniform(k3, (C,), dtype=jnp.float32, minval=0.5, maxval=1.5)

    # 1) f32 logits, gamma=2 (integer fast path), single tile.
    loss = jax.block_until_ready(focal_loss(logits, target, weight, gamma=gamma))
    ref = focal_loss_ref(logits, target, weight, gamma=gamma)
    assert jnp.allclose(loss, ref, rtol=1e-5, atol=1e-5), (loss, ref)

    # 2) Multi-tile grid with a partial last tile (N=42, TM=8) and gamma=0 path.
    N2 = 42
    logits2 = jax.random.normal(k1, (N2, C), dtype=jnp.float32)
    target2 = jax.random.randint(k2, (N2,), 0, C, dtype=jnp.int32)
    loss2 = jax.block_until_ready(
        focal_loss(logits2, target2, weight, gamma=0.0, block_rows=8))
    ref2 = focal_loss_ref(logits2, target2, weight, gamma=0.0)
    assert jnp.allclose(loss2, ref2, rtol=1e-5, atol=1e-5), (loss2, ref2)

    # 3) bf16 logits enter the kernel at native width (half the DMA bytes).
    loss3 = jax.block_until_ready(
        focal_loss(logits.astype(jnp.bfloat16), target, weight, gamma=gamma))
    ref3 = focal_loss_ref(logits.astype(jnp.bfloat16).astype(jnp.float32),
                          target, weight, gamma=gamma)
    assert jnp.allclose(loss3, ref3, rtol=1e-5, atol=1e-5), (loss3, ref3)

    print("KERNEL_OK")
</pallas_src>

<mosaic_0001>
module attributes {stable_mosaic.version = 11 : i64} {
  func.func @focal_loss_kernel(%arg0: i32, %arg1: memref<8x10xf32, #tpu.memory_space<vmem>>, %arg2: memref<8x1xi32, #tpu.memory_space<vmem>>, %arg3: memref<1x10xf32, #tpu.memory_space<vmem>>, %arg4: memref<8x1xf32, #tpu.memory_space<vmem>>) attributes {dimension_semantics = [#tpu.dimension_semantics<parallel>], iteration_bounds = array<i64: 1>, scalar_prefetch = 0 : i64, scratch_operands = 0 : i64, tpu.core_type = #tpu.core_type<tc>, window_params = [{transform_indices = @transform_0, window_bounds = array<i64: 8, 10>}, {transform_indices = @transform_1, window_bounds = array<i64: 8, 1>}, {pipeline_mode = #tpu.pipeline_mode<synchronous>, transform_indices = @transform_2, window_bounds = array<i64: 1, 10>}, {transform_indices = @transform_3, window_bounds = array<i64: 8, 1>}]} {
    %c0 = arith.constant 0 : index
    %c0_0 = arith.constant 0 : index
    %0 = vector.load %arg1[%c0, %c0_0] : memref<8x10xf32, #tpu.memory_space<vmem>>, vector<8x10xf32>
    %c0_1 = arith.constant 0 : index
    %c0_2 = arith.constant 0 : index
    %1 = vector.load %arg2[%c0_1, %c0_2] : memref<8x1xi32, #tpu.memory_space<vmem>>, vector<8x1xi32>
    %c0_3 = arith.constant 0 : index
    %c0_4 = arith.constant 0 : index
    %2 = vector.load %arg3[%c0_3, %c0_4] : memref<1x10xf32, #tpu.memory_space<vmem>>, vector<1x10xf32>
    %3 = tpu.iota {dimensions = array<i32: 1>} : vector<8x10xi32>
    %4 = vector.broadcast %1 : vector<8x1xi32> to vector<8x10xi32>
    %5 = arith.cmpi eq, %3, %4 : vector<8x10xi32>
    %cst = arith.constant dense<0xFF800000> : vector<8xf32>
    %6 = vector.multi_reduction <maximumf>, %0, %cst [1] : vector<8x10xf32> to vector<8xf32>
    %7 = vector.shape_cast %6 : vector<8xf32> to vector<8x1xf32>
    %cst_5 = arith.constant 0.000000e+00 : f32
    %8 = vector.broadcast %cst_5 : f32 to vector<8x10xf32>
    %9 = arith.select %5, %0, %8 : vector<8x10xi1>, vector<8x10xf32>
    %cst_6 = arith.constant dense<0.000000e+00> : vector<8xf32>
    %10 = vector.multi_reduction <add>, %9, %cst_6 [1] : vector<8x10xf32> to vector<8xf32>
    %11 = vector.shape_cast %10 : vector<8xf32> to vector<8x1xf32>
    %12 = vector.broadcast %7 : vector<8x1xf32> to vector<8x10xf32>
    %13 = arith.subf %0, %12 : vector<8x10xf32>
    %14 = math.exp %13 : vector<8x10xf32>
    %cst_7 = arith.constant dense<0.000000e+00> : vector<8xf32>
    %15 = vector.multi_reduction <add>, %14, %cst_7 [1] : vector<8x10xf32> to vector<8xf32>
    %16 = vector.shape_cast %15 : vector<8xf32> to vector<8x1xf32>
    %17 = math.log %16 : vector<8x1xf32>
    %18 = arith.subf %11, %7 : vector<8x1xf32>
    %19 = arith.subf %18, %17 : vector<8x1xf32>
    %20 = vector.shape_cast %2 : vector<1x10xf32> to vector<1x10xf32>
    %21 = vector.broadcast %20 : vector<1x10xf32> to vector<8x10xf32>
    %cst_8 = arith.constant 0.000000e+00 : f32
    %22 = vector.broadcast %cst_8 : f32 to vector<8x10xf32>
    %23 = arith.select %5, %21, %22 : vector<8x10xi1>, vector<8x10xf32>
    %cst_9 = arith.constant dense<0.000000e+00> : vector<8xf32>
    %24 = vector.multi_reduction <add>, %23, %cst_9 [1] : vector<8x10xf32> to vector<8xf32>
    %25 = vector.shape_cast %24 : vector<8xf32> to vector<8x1xf32>
    %26 = arith.mulf %19, %25 : vector<8x1xf32>
    %27 = math.exp %19 : vector<8x1xf32>
    %cst_10 = arith.constant 1.000000e+00 : f32
    %28 = vector.broadcast %cst_10 : f32 to vector<8x1xf32>
    %29 = arith.subf %28, %27 : vector<8x1xf32>
    %30 = arith.mulf %29, %29 : vector<8x1xf32>
    %31 = arith.mulf %26, %30 : vector<8x1xf32>
    %c0_11 = arith.constant 0 : index
    %c0_12 = arith.constant 0 : index
    %32 = vector.load %arg4[%c0_11, %c0_12] : memref<8x1xf32, #tpu.memory_space<vmem>>, vector<8x1xf32>
    tpu.vector_store %arg4[%c0_11, %c0_12], %31 {strides = array<i32>} : memref<8x1xf32, #tpu.memory_space<vmem>>, vector<8x1xf32>,
    return
  }
  func.func @transform_0(%arg0: i32) -> (i32, i32) {
    %c0_i32 = arith.constant 0 : i32
    %c0_i32_0 = arith.constant 0 : i32
    return %arg0, %c0_i32 : i32, i32
  }
  func.func @transform_1(%arg0: i32) -> (i32, i32) {
    %c0_i32 = arith.constant 0 : i32
    %c0_i32_0 = arith.constant 0 : i32
    return %arg0, %c0_i32 : i32, i32
  }
  func.func @transform_2(%arg0: i32) -> (i32, i32) {
    %c0_i32 = arith.constant 0 : i32
    %c0_i32_0 = arith.constant 0 : i32
    %c0_i32_1 = arith.constant 0 : i32
    return %c0_i32, %c0_i32_0 : i32, i32
  }
  func.func @transform_3(%arg0: i32) -> (i32, i32) {
    %c0_i32 = arith.constant 0 : i32
    %c0_i32_0 = arith.constant 0 : i32
    return %arg0, %c0_i32 : i32, i32
  }
}

</mosaic_0001>

<llo_original>
// kernel: tpu_custom_call.1
$region0: #{tpu_custom_call.1}
  #allocation0 [shape = 'u32[]', space=smem, size = 0x4, offset = 0x4, fixed_abs, tag = 'smem constant byte address 0x4 - core index']
  #allocation1 [shape = 'u32[144,128]{1,0:T(1,128)}', space=vmem, size = 0x12000, scoped, tag = 'internal scratch']
  %s0 = inlined_call_operand.vmem [shape: f32[8,10], index: 0, kind: input, shape index: {}]
  %s1 = inlined_call_operand.vmem [shape: s32[8,1], index: 1, kind: input, shape index: {}]
  %s2 = inlined_call_operand.vmem [shape: f32[1,10], index: 2, kind: input, shape index: {}]
  %s3 = inlined_call_operand.vmem [shape: f32[8,1], index: 3, kind: output, shape index: {}]
  %s4 = sld [smem:[#allocation0]]
  $region22: #{tpu_custom_call.1} parent=0
    _
  %s6 = ssub.s32 1, %s4
  %s7 = scalar_select 0, %s6, %s4
  // Predicated region
  $region2: #{tpu_custom_call.1} parent=0 // pred_check
    _
  $region3: #{tpu_custom_call.1} parent=0 // pred_check_branch
    %9 = sbr.rel (0) target = $region5
  $region4: #{tpu_custom_call.1} parent=0 // pred_region
    _
  $region5: #{tpu_custom_call.1} parent=0 // pred_fallthru
    _
  // Predicated region
  $region6: #{tpu_custom_call.1} parent=0 // pred_check
    _
  $region7: #{tpu_custom_call.1} parent=0 // pred_check_branch
    %11 = sbr.rel (0) target = $region9
  $region8: #{tpu_custom_call.1} parent=0 // pred_region
    _
  $region9: #{tpu_custom_call.1} parent=0 // pred_fallthru
    _
  // Predicated region
  $region10: #{tpu_custom_call.1} parent=0 // pred_check
    _
  $region11: #{tpu_custom_call.1} parent=0 // pred_check_branch
    %13 = sbr.rel (0) target = $region13
  $region12: #{tpu_custom_call.1} parent=0 // pred_region
    _
  $region13: #{tpu_custom_call.1} parent=0 // pred_fallthru
    _
  %v14 = vld [vmem:[%s0] sm:$0xff]
  %v15 = vld [vmem:[%s1] sm:$0xff]
  %v16 = vld [vmem:[%s2] sm:$0x1]
  %v17 = vlaneseq
  %v18 = vand.u32 %v17, 127
  %19 = vset.pattern.permute.xlu0 0
  %20 = vperm.xlu0 %19, %v15
  %v21 = vpop.permute.xlu0 %20
  %vm22 = vcmp.eq.s32.totalorder %v18, %v21
  %vm23 = vcmask 80896
  %v24 = vsel %vm23, %v14, -inf
  %25 = vmax.xlane.f32.xlu0 %v24
  %v26 = vpop.xlane.xlu0 %25
  %v27 = vsel %vm22, %v14, 0.0
  %v28 = vsel %vm23, %v27, 0.0
  %29 = vadd.xlane.f32.xlu0 %v28
  %v30 = vpop.xlane.xlu0 %29
  %v31 = vsub.f32 %v14, %v26
  %v32 = vmul.f32 %v31, 1.442695
  %v33 = vpow.pop %v32
  %v34 = vsel %vm23, %v33, 0.0
  %35 = vadd.xlane.f32.xlu0 %v34
  %v36 = vpop.xlane.xlu0 %35
  %v37 = vlog2.pop %v36
  %v38 = vmul.f32 %v37, 0.6931472
  %v39 = vsub.f32 %v30, %v26
  %v40 = vsub.f32 %v39, %v38
  %v42 = vlaneseq
  %v43 = vshrl.u32 %v42, 7
  %v44 = vsub.s32 0, %v43
  %v45 = vrot.slane %v16, %v44
  %v47 = vsel %vm22, %v45, 0.0
  %v48 = vsel %vm23, %v47, 0.0
  %49 = vadd.xlane.f32.xlu0 %v48
  %v50 = vpop.xlane.xlu0 %49
  %v51 = vmul.f32 %v40, %v50
  %v52 = vmul.f32 %v40, 1.442695
  %v53 = vpow.pop %v52
  %v54 = vsub.f32 1.0, %v53
  %v55 = vmul.f32 %v54, %v54
  %v56 = vmul.f32 %v51, %v55
  %vm57 = vcmask 7168
  %58 = vst.msk [vmem:[%s3] sm:$0xff] %vm57, %v56
  // Predicated region
  $region14: #{tpu_custom_call.1} parent=0 // pred_check
    _
  $region15: #{tpu_custom_call.1} parent=0 // pred_check_branch
    %60 = sbr.rel (0) target = $region17
  $region16: #{tpu_custom_call.1} parent=0 // pred_region
    _
  $region17: #{tpu_custom_call.1} parent=0 // pred_fallthru
    _
  // Predicated region
  $region18: #{tpu_custom_call.1} parent=0 // pred_check
    _
  $region19: #{tpu_custom_call.1} parent=0 // pred_check_branch
    %62 = sbr.rel (0) target = $region21
  $region20: #{tpu_custom_call.1} parent=0 // pred_region
    _
  $region21: #{tpu_custom_call.1} parent=0 // pred_fallthru
    _

</llo_original>
